<compile_context>
chip_gen: v6e
topology: v6e:2x2x1
jax: 0.10.0
libtpu: 0.0.40
codegen_flags: <defaults>
</compile_context>

<pallas_src>
import functools

import jax
import jax.numpy as jnp
from jax.experimental import pallas as pl
from jax.experimental.pallas import tpu as pltpu

INPUT_DIM = 2
HIDDEN_DIM = 128
OUTPUT_DIM = 2
NEG_SLOPE = 0.01  # nn.LeakyReLU() default

# Generation detection (static, module level): megacore split only on v7x,
# bf16 VALU epilogue only on v6e/v7x.
try:
    _DEVICE_KIND = jax.devices()[0].device_kind.lower()
except Exception:  # pragma: no cover
    _DEVICE_KIND = ""
_CORES_PER_CHIP = 2 if "v7" in _DEVICE_KIND else 1
_BF16_EPILOGUE = ("v6" in _DEVICE_KIND) or ("v7" in _DEVICE_KIND)


def _leaky_relu(v):
    # 2 VALU ops (mul + max) instead of cmp+select+mul; identical for 0<slope<1.
    return jnp.maximum(v, NEG_SLOPE * v)


def _round_up(n, m):
    return ((n + m - 1) // m) * m


def _mlp_kernel(y_ref, t_ref,
                w1_ref, b1_ref, w2_ref, b2_ref, w3_ref, b3_ref,
                w4_ref, b4_ref, w5_ref, b5_ref, w6_ref, b6_ref,
                o_ref, *, input_dim, use_bf16, bf16_epilogue):
    f32 = jnp.float32
    mxu_dt = jnp.bfloat16 if use_bf16 else f32
    ep_dt = jnp.bfloat16 if (use_bf16 and bf16_epilogue) else f32

    y = y_ref[...].astype(f32)      # (tm, input_dim)
    t = t_ref[...].astype(f32)      # (tm, 1)
    w1 = w1_ref[...].astype(f32)    # (input_dim + 1, hidden) -- tiny, stays f32

    # Layer 1: K = input_dim + 1 (= 3) is far too small for the MXU, so compute
    # it as broadcasted outer products on the VPU.  The activation is
    # lane-dense (tm, 128) from the first layer onward.
    h = t * w1[input_dim:input_dim + 1, :] + b1_ref[...]
    for c in range(input_dim):      # static unroll (input_dim == 2)
        h = h + y[:, c:c + 1] * w1[c:c + 1, :]
    h = _leaky_relu(h)              # f32

    def hidden(x, w_ref, b_ref):
        acc = jnp.dot(x.astype(mxu_dt), w_ref[...],
                      preferred_element_type=f32)
        # Bias + LeakyReLU epilogue in ep_dt (bf16 on v6e/v7x fast path,
        # f32 otherwise).  Bias is already stored in ep_dt for layers 2-5.
        return _leaky_relu(acc.astype(ep_dt) + b_ref[...].astype(ep_dt))

    h = hidden(h, w2_ref, b2_ref)
    h = hidden(h, w3_ref, b3_ref)
    h = hidden(h, w4_ref, b4_ref)
    h = hidden(h, w5_ref, b5_ref)

    # Layer 6: narrow-N matmul (128 -> output_dim); f32 bias/epilogue, direct
    # (tm, output_dim) store (no lane padding, no wrapper slice).
    out = jnp.dot(h.astype(mxu_dt), w6_ref[...],
                  preferred_element_type=f32) + b6_ref[...]
    o_ref[...] = out.astype(o_ref.dtype)


def init_params(key, input_dim=INPUT_DIM, hidden_dim=HIDDEN_DIM,
                output_dim=OUTPUT_DIM):
    """Deterministic init matching the nn.Linear shapes (stored transposed)."""
    dims = [(input_dim + 1, hidden_dim)] + \
           [(hidden_dim, hidden_dim)] * 4 + \
           [(hidden_dim, output_dim)]
    params = []
    for (fan_in, fan_out) in dims:
        key, kw, kb = jax.random.split(key, 3)
        bound = 1.0 / jnp.sqrt(fan_in)  # same scale as PyTorch's default init
        w = jax.random.uniform(kw, (fan_in, fan_out), jnp.float32, -bound, bound)
        b = jax.random.uniform(kb, (1, fan_out), jnp.float32, -bound, bound)
        params.append((w, b))
    return params


@functools.partial(jax.jit, static_argnames=("tm", "use_bf16"))
def flow_matching_forward(y, t, params, tm=1024, use_bf16=True):
    """Pallas implementation of FlowMatching.forward(y, t)."""
    f32 = jnp.float32
    y = y.astype(f32)
    t = t.astype(f32)
    B, input_dim = y.shape
    hidden = params[0][0].shape[1]
    output_dim = params[-1][0].shape[1]
    wdt = jnp.bfloat16 if use_bf16 else f32                       # MXU operands
    edt = jnp.bfloat16 if (use_bf16 and _BF16_EPILOGUE) else f32  # epilogue/bias

    # Batch tile: as big as B allows (up to tm, multiple of 8).  Per-step
    # overhead (~0.35us) dominates small steps, so bigger is better; only on
    # v7x do we force >= 2 steps per TensorCore (>= 4 total) so both cores get
    # work and each keeps an intra-core pipeline.
    tm_eff = max(8, min(tm, _round_up(B, 8)))
    if _CORES_PER_CHIP > 1:
        target_steps = 2 * _CORES_PER_CHIP
        if pl.cdiv(B, tm_eff) < target_steps and B >= 8 * target_steps:
            tm_eff = max(8, _round_up(pl.cdiv(B, target_steps), 8))
    grid = (pl.cdiv(B, tm_eff),)

    # Parameter packing: layer-1 weight stays f32 (VPU path); layers 2..6 go
    # through the MXU as bf16 when use_bf16; hidden-layer biases in the
    # epilogue dtype; layer-1 / layer-6 biases stay f32.
    (w1, b1), (w2, b2), (w3, b3), (w4, b4), (w5, b5), (w6, b6) = params
    flat = [w1.astype(f32), b1.astype(f32),
            w2.astype(wdt), b2.astype(edt),
            w3.astype(wdt), b3.astype(edt),
            w4.astype(wdt), b4.astype(edt),
            w5.astype(wdt), b5.astype(edt),
            w6.astype(wdt), b6.astype(f32)]

    in_specs = [pl.BlockSpec((tm_eff, input_dim), lambda i: (i, 0)),  # y
                pl.BlockSpec((tm_eff, 1), lambda i: (i, 0))]          # t
    for p in flat:  # whole weight/bias presented to every grid step
        in_specs.append(pl.BlockSpec(p.shape, lambda i: (0, 0)))

    # Direct narrow output: last block dim equals the full array dim -> legal.
    out_specs = pl.BlockSpec((tm_eff, output_dim), lambda i: (i, 0))

    flops = 2 * B * ((input_dim + 1) * hidden
                     + 4 * hidden * hidden
                     + hidden * output_dim)
    bytes_accessed = (y.size * 4 + t.size * 4 + B * output_dim * 4
                      + sum(int(p.size) * p.dtype.itemsize for p in flat))

    kernel = functools.partial(_mlp_kernel, input_dim=input_dim,
                               use_bf16=use_bf16,
                               bf16_epilogue=_BF16_EPILOGUE)

    return pl.pallas_call(
        kernel,
        out_shape=jax.ShapeDtypeStruct((B, output_dim), f32),
        grid_spec=pltpu.PrefetchScalarGridSpec(
            num_scalar_prefetch=0,
            grid=grid,
            in_specs=in_specs,
            out_specs=out_specs,
        ),
        compiler_params=pltpu.CompilerParams(
            dimension_semantics=("parallel",)),
        cost_estimate=pl.CostEstimate(flops=flops, transcendentals=0,
                                      bytes_accessed=bytes_accessed),
    )(y, t, *flat)


def flow_matching_reference(y, t, params):
    """Plain-JAX f32 reference for correctness checking."""
    h = jnp.concatenate([y, t], axis=1).astype(jnp.float32)
    for (w, b) in params[:-1]:
        h = jnp.maximum(h @ w + b, NEG_SLOPE * (h @ w + b))
    w, b = params[-1]
    return h @ w + b


if __name__ == "__main__":
    key = jax.random.PRNGKey(0)
    kp, ky, kt = jax.random.split(key, 3)

    params = init_params(kp)

    B = 8
    y = jax.random.normal(ky, (B, INPUT_DIM), jnp.float32)
    t = jax.random.uniform(kt, (B, 1), jnp.float32)

    ref = flow_matching_reference(y, t, params)

    # Exact f32 path (tight tolerance).
    out_f32 = jax.block_until_ready(
        flow_matching_forward(y, t, params, use_bf16=False))
    assert out_f32.shape == (B, OUTPUT_DIM), out_f32.shape
    assert jnp.allclose(out_f32, ref, atol=1e-4, rtol=1e-4), (
        float(jnp.max(jnp.abs(out_f32 - ref))))

    # Fast bf16-operand path (MXU), f32 accumulation (loose tolerance; five
    # chained 128-deep bf16 matmuls compound rounding -- do not tighten).
    out_bf16 = jax.block_until_ready(flow_matching_forward(y, t, params))
    assert out_bf16.shape == (B, OUTPUT_DIM), out_bf16.shape
    assert jnp.allclose(out_bf16, ref, atol=5e-2, rtol=5e-2), (
        float(jnp.max(jnp.abs(out_bf16 - ref))))

    # Ragged batch (B not a multiple of 8): exercises the masked last block.
    B2 = 300
    y2 = jax.random.normal(ky, (B2, INPUT_DIM), jnp.float32)
    t2 = jax.random.uniform(kt, (B2, 1), jnp.float32)
    ref2 = flow_matching_reference(y2, t2, params)
    out2 = jax.block_until_ready(
        flow_matching_forward(y2, t2, params, use_bf16=False))
    assert out2.shape == (B2, OUTPUT_DIM), out2.shape
    assert jnp.allclose(out2, ref2, atol=1e-4, rtol=1e-4), (
        float(jnp.max(jnp.abs(out2 - ref2))))

    print("KERNEL_OK")
</pallas_src>

<mosaic_0001>
module attributes {stable_mosaic.version = 11 : i64} {
  func.func @_mlp_kernel(%arg0: i32, %arg1: memref<8x2xf32, #tpu.memory_space<vmem>>, %arg2: memref<8x1xf32, #tpu.memory_space<vmem>>, %arg3: memref<3x128xf32, #tpu.memory_space<vmem>>, %arg4: memref<1x128xf32, #tpu.memory_space<vmem>>, %arg5: memref<128x128xf32, #tpu.memory_space<vmem>>, %arg6: memref<1x128xf32, #tpu.memory_space<vmem>>, %arg7: memref<128x128xf32, #tpu.memory_space<vmem>>, %arg8: memref<1x128xf32, #tpu.memory_space<vmem>>, %arg9: memref<128x128xf32, #tpu.memory_space<vmem>>, %arg10: memref<1x128xf32, #tpu.memory_space<vmem>>, %arg11: memref<128x128xf32, #tpu.memory_space<vmem>>, %arg12: memref<1x128xf32, #tpu.memory_space<vmem>>, %arg13: memref<128x2xf32, #tpu.memory_space<vmem>>, %arg14: memref<1x2xf32, #tpu.memory_space<vmem>>, %arg15: memref<8x2xf32, #tpu.memory_space<vmem>>) attributes {dimension_semantics = [#tpu.dimension_semantics<parallel>], iteration_bounds = array<i64: 1>, scalar_prefetch = 0 : i64, scratch_operands = 0 : i64, tpu.core_type = #tpu.core_type<tc>, window_params = [{transform_indices = @transform_0, window_bounds = array<i64: 8, 2>}, {transform_indices = @transform_1, window_bounds = array<i64: 8, 1>}, {pipeline_mode = #tpu.pipeline_mode<synchronous>, transform_indices = @transform_2, window_bounds = array<i64: 3, 128>}, {pipeline_mode = #tpu.pipeline_mode<synchronous>, transform_indices = @transform_3, window_bounds = array<i64: 1, 128>}, {pipeline_mode = #tpu.pipeline_mode<synchronous>, transform_indices = @transform_4, window_bounds = array<i64: 128, 128>}, {pipeline_mode = #tpu.pipeline_mode<synchronous>, transform_indices = @transform_5, window_bounds = array<i64: 1, 128>}, {pipeline_mode = #tpu.pipeline_mode<synchronous>, transform_indices = @transform_6, window_bounds = array<i64: 128, 128>}, {pipeline_mode = #tpu.pipeline_mode<synchronous>, transform_indices = @transform_7, window_bounds = array<i64: 1, 128>}, {pipeline_mode = #tpu.pipeline_mode<synchronous>, transform_indices = @transform_8, window_bounds = array<i64: 128, 128>}, {pipeline_mode = #tpu.pipeline_mode<synchronous>, transform_indices = @transform_9, window_bounds = array<i64: 1, 128>}, {pipeline_mode = #tpu.pipeline_mode<synchronous>, transform_indices = @transform_10, window_bounds = array<i64: 128, 128>}, {pipeline_mode = #tpu.pipeline_mode<synchronous>, transform_indices = @transform_11, window_bounds = array<i64: 1, 128>}, {pipeline_mode = #tpu.pipeline_mode<synchronous>, transform_indices = @transform_12, window_bounds = array<i64: 128, 2>}, {pipeline_mode = #tpu.pipeline_mode<synchronous>, transform_indices = @transform_13, window_bounds = array<i64: 1, 2>}, {transform_indices = @transform_14, window_bounds = array<i64: 8, 2>}]} {
    %c0 = arith.constant 0 : index
    %c0_0 = arith.constant 0 : index
    %0 = vector.load %arg1[%c0, %c0_0] : memref<8x2xf32, #tpu.memory_space<vmem>>, vector<8x2xf32>
    %c0_1 = arith.constant 0 : index
    %c0_2 = arith.constant 0 : index
    %1 = vector.load %arg2[%c0_1, %c0_2] : memref<8x1xf32, #tpu.memory_space<vmem>>, vector<8x1xf32>
    %c0_3 = arith.constant 0 : index
    %c0_4 = arith.constant 0 : index
    %2 = vector.load %arg3[%c0_3, %c0_4] : memref<3x128xf32, #tpu.memory_space<vmem>>, vector<3x128xf32>
    %3 = vector.extract_strided_slice %2 {offsets = [2, 0], sizes = [1, 128], strides = [1, 1]} : vector<3x128xf32> to vector<1x128xf32>
    %4 = vector.broadcast %1 : vector<8x1xf32> to vector<8x128xf32>
    %5 = vector.broadcast %3 : vector<1x128xf32> to vector<8x128xf32>
    %6 = arith.mulf %4, %5 : vector<8x128xf32>
    %c0_5 = arith.constant 0 : index
    %c0_6 = arith.constant 0 : index
    %7 = vector.load %arg4[%c0_5, %c0_6] : memref<1x128xf32, #tpu.memory_space<vmem>>, vector<1x128xf32>
    %8 = vector.broadcast %7 : vector<1x128xf32> to vector<8x128xf32>
    %9 = arith.addf %6, %8 : vector<8x128xf32>
    %10 = vector.extract_strided_slice %0 {offsets = [0, 0], sizes = [8, 1], strides = [1, 1]} : vector<8x2xf32> to vector<8x1xf32>
    %11 = vector.extract_strided_slice %2 {offsets = [0, 0], sizes = [1, 128], strides = [1, 1]} : vector<3x128xf32> to vector<1x128xf32>
    %12 = vector.broadcast %10 : vector<8x1xf32> to vector<8x128xf32>
    %13 = vector.broadcast %11 : vector<1x128xf32> to vector<8x128xf32>
    %14 = arith.mulf %12, %13 : vector<8x128xf32>
    %15 = arith.addf %9, %14 : vector<8x128xf32>
    %16 = vector.extract_strided_slice %0 {offsets = [0, 1], sizes = [8, 1], strides = [1, 1]} : vector<8x2xf32> to vector<8x1xf32>
    %17 = vector.extract_strided_slice %2 {offsets = [1, 0], sizes = [1, 128], strides = [1, 1]} : vector<3x128xf32> to vector<1x128xf32>
    %18 = vector.broadcast %16 : vector<8x1xf32> to vector<8x128xf32>
    %19 = vector.broadcast %17 : vector<1x128xf32> to vector<8x128xf32>
    %20 = arith.mulf %18, %19 : vector<8x128xf32>
    %21 = arith.addf %15, %20 : vector<8x128xf32>
    %cst = arith.constant 0.00999999977 : f32
    %22 = vector.broadcast %cst : f32 to vector<8x128xf32>
    %23 = arith.mulf %22, %21 : vector<8x128xf32>
    %24 = arith.maximumf %21, %23 : vector<8x128xf32>
    %c0_7 = arith.constant 0 : index
    %c0_8 = arith.constant 0 : index
    %25 = vector.load %arg5[%c0_7, %c0_8] : memref<128x128xf32, #tpu.memory_space<vmem>>, vector<128x128xf32>
    %cst_9 = arith.constant dense<0.000000e+00> : vector<8x128xf32>
    %26 = tpu.matmul %24, %25, %cst_9 {dimension_numbers = #tpu.dot_dimension_numbers<[1], [0], [0], [1], [0, 0, 1, 1], [], []>} : vector<8x128xf32>, vector<128x128xf32>, vector<8x128xf32> -> vector<8x128xf32>
    %c0_10 = arith.constant 0 : index
    %c0_11 = arith.constant 0 : index
    %27 = vector.load %arg6[%c0_10, %c0_11] : memref<1x128xf32, #tpu.memory_space<vmem>>, vector<1x128xf32>
    %28 = vector.broadcast %27 : vector<1x128xf32> to vector<8x128xf32>
    %29 = arith.addf %26, %28 : vector<8x128xf32>
    %cst_12 = arith.constant 0.00999999977 : f32
    %30 = vector.broadcast %cst_12 : f32 to vector<8x128xf32>
    %31 = arith.mulf %30, %29 : vector<8x128xf32>
    %32 = arith.maximumf %29, %31 : vector<8x128xf32>
    %c0_13 = arith.constant 0 : index
    %c0_14 = arith.constant 0 : index
    %33 = vector.load %arg7[%c0_13, %c0_14] : memref<128x128xf32, #tpu.memory_space<vmem>>, vector<128x128xf32>
    %cst_15 = arith.constant dense<0.000000e+00> : vector<8x128xf32>
    %34 = tpu.matmul %32, %33, %cst_15 {dimension_numbers = #tpu.dot_dimension_numbers<[1], [0], [0], [1], [0, 0, 1, 1], [], []>} : vector<8x128xf32>, vector<128x128xf32>, vector<8x128xf32> -> vector<8x128xf32>
    %c0_16 = arith.constant 0 : index
    %c0_17 = arith.constant 0 : index
    %35 = vector.load %arg8[%c0_16, %c0_17] : memref<1x128xf32, #tpu.memory_space<vmem>>, vector<1x128xf32>
    %36 = vector.broadcast %35 : vector<1x128xf32> to vector<8x128xf32>
    %37 = arith.addf %34, %36 : vector<8x128xf32>
    %cst_18 = arith.constant 0.00999999977 : f32
    %38 = vector.broadcast %cst_18 : f32 to vector<8x128xf32>
    %39 = arith.mulf %38, %37 : vector<8x128xf32>
    %40 = arith.maximumf %37, %39 : vector<8x128xf32>
    %c0_19 = arith.constant 0 : index
    %c0_20 = arith.constant 0 : index
    %41 = vector.load %arg9[%c0_19, %c0_20] : memref<128x128xf32, #tpu.memory_space<vmem>>, vector<128x128xf32>
    %cst_21 = arith.constant dense<0.000000e+00> : vector<8x128xf32>
    %42 = tpu.matmul %40, %41, %cst_21 {dimension_numbers = #tpu.dot_dimension_numbers<[1], [0], [0], [1], [0, 0, 1, 1], [], []>} : vector<8x128xf32>, vector<128x128xf32>, vector<8x128xf32> -> vector<8x128xf32>
    %c0_22 = arith.constant 0 : index
    %c0_23 = arith.constant 0 : index
    %43 = vector.load %arg10[%c0_22, %c0_23] : memref<1x128xf32, #tpu.memory_space<vmem>>, vector<1x128xf32>
    %44 = vector.broadcast %43 : vector<1x128xf32> to vector<8x128xf32>
    %45 = arith.addf %42, %44 : vector<8x128xf32>
    %cst_24 = arith.constant 0.00999999977 : f32
    %46 = vector.broadcast %cst_24 : f32 to vector<8x128xf32>
    %47 = arith.mulf %46, %45 : vector<8x128xf32>
    %48 = arith.maximumf %45, %47 : vector<8x128xf32>
    %c0_25 = arith.constant 0 : index
    %c0_26 = arith.constant 0 : index
    %49 = vector.load %arg11[%c0_25, %c0_26] : memref<128x128xf32, #tpu.memory_space<vmem>>, vector<128x128xf32>
    %cst_27 = arith.constant dense<0.000000e+00> : vector<8x128xf32>
    %50 = tpu.matmul %48, %49, %cst_27 {dimension_numbers = #tpu.dot_dimension_numbers<[1], [0], [0], [1], [0, 0, 1, 1], [], []>} : vector<8x128xf32>, vector<128x128xf32>, vector<8x128xf32> -> vector<8x128xf32>
    %c0_28 = arith.constant 0 : index
    %c0_29 = arith.constant 0 : index
    %51 = vector.load %arg12[%c0_28, %c0_29] : memref<1x128xf32, #tpu.memory_space<vmem>>, vector<1x128xf32>
    %52 = vector.broadcast %51 : vector<1x128xf32> to vector<8x128xf32>
    %53 = arith.addf %50, %52 : vector<8x128xf32>
    %cst_30 = arith.constant 0.00999999977 : f32
    %54 = vector.broadcast %cst_30 : f32 to vector<8x128xf32>
    %55 = arith.mulf %54, %53 : vector<8x128xf32>
    %56 = arith.maximumf %53, %55 : vector<8x128xf32>
    %c0_31 = arith.constant 0 : index
    %c0_32 = arith.constant 0 : index
    %57 = vector.load %arg13[%c0_31, %c0_32] : memref<128x2xf32, #tpu.memory_space<vmem>>, vector<128x2xf32>
    %cst_33 = arith.constant dense<0.000000e+00> : vector<8x2xf32>
    %58 = tpu.matmul %56, %57, %cst_33 {dimension_numbers = #tpu.dot_dimension_numbers<[1], [0], [0], [1], [0, 0, 1, 1], [], []>} : vector<8x128xf32>, vector<128x2xf32>, vector<8x2xf32> -> vector<8x2xf32>
    %c0_34 = arith.constant 0 : index
    %c0_35 = arith.constant 0 : index
    %59 = vector.load %arg14[%c0_34, %c0_35] : memref<1x2xf32, #tpu.memory_space<vmem>>, vector<1x2xf32>
    %60 = vector.broadcast %59 : vector<1x2xf32> to vector<8x2xf32>
    %61 = arith.addf %58, %60 : vector<8x2xf32>
    %c0_36 = arith.constant 0 : index
    %c0_37 = arith.constant 0 : index
    %62 = vector.load %arg15[%c0_36, %c0_37] : memref<8x2xf32, #tpu.memory_space<vmem>>, vector<8x2xf32>
    tpu.vector_store %arg15[%c0_36, %c0_37], %61 {strides = array<i32>} : memref<8x2xf32, #tpu.memory_space<vmem>>, vector<8x2xf32>,
    return
  }
  func.func @transform_0(%arg0: i32) -> (i32, i32) {
    %c0_i32 = arith.constant 0 : i32
    %c0_i32_0 = arith.constant 0 : i32
    return %arg0, %c0_i32 : i32, i32
  }
  func.func @transform_1(%arg0: i32) -> (i32, i32) {
    %c0_i32 = arith.constant 0 : i32
    %c0_i32_0 = arith.constant 0 : i32
    return %arg0, %c0_i32 : i32, i32
  }
  func.func @transform_2(%arg0: i32) -> (i32, i32) {
    %c0_i32 = arith.constant 0 : i32
    %c0_i32_0 = arith.constant 0 : i32
    %c0_i32_1 = arith.constant 0 : i32
    return %c0_i32, %c0_i32_0 : i32, i32
  }
  func.func @transform_3(%arg0: i32) -> (i32, i32) {
    %c0_i32 = arith.constant 0 : i32
    %c0_i32_0 = arith.constant 0 : i32
    %c0_i32_1 = arith.constant 0 : i32
    return %c0_i32, %c0_i32_0 : i32, i32
  }
  func.func @transform_4(%arg0: i32) -> (i32, i32) {
    %c0_i32 = arith.constant 0 : i32
    %c0_i32_0 = arith.constant 0 : i32
    %c0_i32_1 = arith.constant 0 : i32
    return %c0_i32, %c0_i32_0 : i32, i32
  }
  func.func @transform_5(%arg0: i32) -> (i32, i32) {
    %c0_i32 = arith.constant 0 : i32
    %c0_i32_0 = arith.constant 0 : i32
    %c0_i32_1 = arith.constant 0 : i32
    return %c0_i32, %c0_i32_0 : i32, i32
  }
  func.func @transform_6(%arg0: i32) -> (i32, i32) {
    %c0_i32 = arith.constant 0 : i32
    %c0_i32_0 = arith.constant 0 : i32
    %c0_i32_1 = arith.constant 0 : i32
    return %c0_i32, %c0_i32_0 : i32, i32
  }
  func.func @transform_7(%arg0: i32) -> (i32, i32) {
    %c0_i32 = arith.constant 0 : i32
    %c0_i32_0 = arith.constant 0 : i32
    %c0_i32_1 = arith.constant 0 : i32
    return %c0_i32, %c0_i32_0 : i32, i32
  }
  func.func @transform_8(%arg0: i32) -> (i32, i32) {
    %c0_i32 = arith.constant 0 : i32
    %c0_i32_0 = arith.constant 0 : i32
    %c0_i32_1 = arith.constant 0 : i32
    return %c0_i32, %c0_i32_0 : i32, i32
  }
  func.func @transform_9(%arg0: i32) -> (i32, i32) {
    %c0_i32 = arith.constant 0 : i32
    %c0_i32_0 = arith.constant 0 : i32
    %c0_i32_1 = arith.constant 0 : i32
    return %c0_i32, %c0_i32_0 : i32, i32
  }
  func.func @transform_10(%arg0: i32) -> (i32, i32) {
    %c0_i32 = arith.constant 0 : i32
    %c0_i32_0 = arith.constant 0 : i32
    %c0_i32_1 = arith.constant 0 : i32
    return %c0_i32, %c0_i32_0 : i32, i32
  }
  func.func @transform_11(%arg0: i32) -> (i32, i32) {
    %c0_i32 = arith.constant 0 : i32
    %c0_i32_0 = arith.constant 0 : i32
    %c0_i32_1 = arith.constant 0 : i32
    return %c0_i32, %c0_i32_0 : i32, i32
  }
  func.func @transform_12(%arg0: i32) -> (i32, i32) {
    %c0_i32 = arith.constant 0 : i32
    %c0_i32_0 = arith.constant 0 : i32
    %c0_i32_1 = arith.constant 0 : i32
    return %c0_i32, %c0_i32_0 : i32, i32
  }
  func.func @transform_13(%arg0: i32) -> (i32, i32) {
    %c0_i32 = arith.constant 0 : i32
    %c0_i32_0 = arith.constant 0 : i32
    %c0_i32_1 = arith.constant 0 : i32
    return %c0_i32, %c0_i32_0 : i32, i32
  }
  func.func @transform_14(%arg0: i32) -> (i32, i32) {
    %c0_i32 = arith.constant 0 : i32
    %c0_i32_0 = arith.constant 0 : i32
    return %arg0, %c0_i32 : i32, i32
  }
}

</mosaic_0001>

<llo_original>
// kernel: flow_matching_forward.1
$region0: #{flow_matching_forward.1}
  #allocation0 [shape = 'u32[]', space=smem, size = 0x4, offset = 0x4, fixed_abs, tag = 'smem constant byte address 0x4 - core index']
  #allocation1 [shape = 'u32[144,128]{1,0:T(1,128)}', space=vmem, size = 0x12000, scoped, tag = 'internal scratch']
  %s0 = inlined_call_operand.vmem [shape: f32[8,2], index: 0, kind: input, shape index: {}]
  %s1 = inlined_call_operand.vmem [shape: f32[8,1], index: 1, kind: input, shape index: {}]
  %s2 = inlined_call_operand.vmem [shape: f32[3,128], index: 2, kind: input, shape index: {}]
  %s3 = inlined_call_operand.vmem [shape: f32[1,128], index: 3, kind: input, shape index: {}]
  %s4 = inlined_call_operand.vmem [shape: f32[128,128], index: 4, kind: input, shape index: {}]
  %s5 = inlined_call_operand.vmem [shape: f32[1,128], index: 5, kind: input, shape index: {}]
  %s6 = inlined_call_operand.hbm [shape: f32[128,128], index: 6, kind: input, shape index: {}]
  %s7 = inlined_call_operand.vmem [shape: f32[1,128], index: 7, kind: input, shape index: {}]
  %s8 = inlined_call_operand.hbm [shape: f32[128,128], index: 8, kind: input, shape index: {}]
  %s9 = inlined_call_operand.vmem [shape: f32[1,128], index: 9, kind: input, shape index: {}]
  %s10 = inlined_call_operand.hbm [shape: f32[128,128], index: 10, kind: input, shape index: {}]
  %s11 = inlined_call_operand.vmem [shape: f32[1,128], index: 11, kind: input, shape index: {}]
  %s12 = inlined_call_operand.vmem [shape: f32[128,2], index: 12, kind: input, shape index: {}]
  %s13 = inlined_call_operand.vmem [shape: f32[1,2], index: 13, kind: input, shape index: {}]
  %s14 = inlined_call_operand.vmem [shape: f32[8,2], index: 14, kind: output, shape index: {}]
  %s15 = sld [smem:[#allocation0]]
  $region78: #{flow_matching_forward.1} parent=0
    _
  %s17 = ssub.s32 1, %s15
  %s18 = scalar_select 0, %s17, %s15
  $region1: #{flow_matching_forward.1} parent=0
    #allocation2 [shape = 'u8[65536]{0}', space=vmem, size = 0x10000, scoped, tag = 'input window, operand 6, single buffered']
    #allocation3 [shape = 's32[1]{0}', space=sflag, size = 0x4, scoped, tag = 'scoped memory for flow_matching_forward.1']
    #allocation4 [shape = 'u8[65536]{0}', space=vmem, size = 0x10000, scoped, tag = 'input window, operand 8, single buffered']
    #allocation5 [shape = 's32[1]{0}', space=sflag, size = 0x4, scoped, tag = 'scoped memory for flow_matching_forward.1']
    #allocation6 [shape = 'u8[65536]{0}', space=vmem, size = 0x10000, scoped, tag = 'input window, operand 10, single buffered']
    %19 = vsyncpa [#allocation3], 0
    %20 = vsyncpa [#allocation5], 0
    // Predicated region
    $region2: #{flow_matching_forward.1} parent=1 // pred_check
      _
    $region3: #{flow_matching_forward.1} parent=1 // pred_check_branch
      %22 = sbr.rel (0) target = $region5
    $region4: #{flow_matching_forward.1} parent=1 // pred_region
      _
    $region5: #{flow_matching_forward.1} parent=1 // pred_fallthru
      _
    // Predicated region
    $region6: #{flow_matching_forward.1} parent=1 // pred_check
      _
    $region7: #{flow_matching_forward.1} parent=1 // pred_check_branch
      %24 = sbr.rel (0) target = $region9
    $region8: #{flow_matching_forward.1} parent=1 // pred_region
      _
    $region9: #{flow_matching_forward.1} parent=1 // pred_fallthru
      _
    // Predicated region
    $region10: #{flow_matching_forward.1} parent=1 // pred_check
      _
    $region11: #{flow_matching_forward.1} parent=1 // pred_check_branch
      %26 = sbr.rel (0) target = $region13
    $region12: #{flow_matching_forward.1} parent=1 // pred_region
      _
    $region13: #{flow_matching_forward.1} parent=1 // pred_fallthru
      _
    // Predicated region
    $region14: #{flow_matching_forward.1} parent=1 // pred_check
      _
    $region15: #{flow_matching_forward.1} parent=1 // pred_check_branch
      %28 = sbr.rel (0) target = $region17
    $region16: #{flow_matching_forward.1} parent=1 // pred_region
      _
    $region17: #{flow_matching_forward.1} parent=1 // pred_fallthru
      _
    // Predicated region
    $region18: #{flow_matching_forward.1} parent=1 // pred_check
      _
    $region19: #{flow_matching_forward.1} parent=1 // pred_check_branch
      %30 = sbr.rel (0) target = $region21
    $region20: #{flow_matching_forward.1} parent=1 // pred_region
      _
    $region21: #{flow_matching_forward.1} parent=1 // pred_fallthru
      _
    // Predicated region
    $region22: #{flow_matching_forward.1} parent=1 // pred_check
      _
    $region23: #{flow_matching_forward.1} parent=1 // pred_check_branch
      %32 = sbr.rel (0) target = $region25
    $region24: #{flow_matching_forward.1} parent=1 // pred_region
      _
    $region25: #{flow_matching_forward.1} parent=1 // pred_fallthru
      _
    // Predicated region
    $region26: #{flow_matching_forward.1} parent=1 // pred_check
      _
    $region27: #{flow_matching_forward.1} parent=1 // pred_check_branch
      %34 = sbr.rel (0) target = $region29
    $region28: #{flow_matching_forward.1} parent=1 // pred_region
      %s36 = ssub.s32 2048, 2048
      %37 = vsyncadd [#allocation3], %s36
      %s38 = sshll.u32 [#allocation2], 4
      %s39 = int_to_ptr.vmem [resolvable:$true] %s38
      %44 = dma.hbm_to_vmem [thread:$0]  %s6, 2048, %s39, [#allocation3], 128, 128, 8
    $region29: #{flow_matching_forward.1} parent=1 // pred_fallthru
      _
    // Predicated region
    $region30: #{flow_matching_forward.1} parent=1 // pred_check
      _
    $region31: #{flow_matching_forward.1} parent=1 // pred_check_branch
      %46 = sbr.rel (0) target = $region33
    $region32: #{flow_matching_forward.1} parent=1 // pred_region
      _
    $region33: #{flow_matching_forward.1} parent=1 // pred_fallthru
      _
    // Predicated region
    $region34: #{flow_matching_forward.1} parent=1 // pred_check
      _
    $region35: #{flow_matching_forward.1} parent=1 // pred_check_branch
      %48 = sbr.rel (0) target = $region37
    $region36: #{flow_matching_forward.1} parent=1 // pred_region
      %s50 = ssub.s32 2048, 2048
      %51 = vsyncadd [#allocation5], %s50
      %s52 = sshll.u32 [#allocation4], 4
      %s53 = int_to_ptr.vmem [resolvable:$true] %s52
      %58 = dma.hbm_to_vmem [thread:$0]  %s8, 2048, %s53, [#allocation5], 128, 128, 8
    $region37: #{flow_matching_forward.1} parent=1 // pred_fallthru
      _
    // Predicated region
    $region38: #{flow_matching_forward.1} parent=1 // pred_check
      _
    $region39: #{flow_matching_forward.1} parent=1 // pred_check_branch
      %60 = sbr.rel (0) target = $region41
    $region40: #{flow_matching_forward.1} parent=1 // pred_region
      _
    $region41: #{flow_matching_forward.1} parent=1 // pred_fallthru
      _
    // Predicated region
    $region42: #{flow_matching_forward.1} parent=1 // pred_check
      _
    $region43: #{flow_matching_forward.1} parent=1 // pred_check_branch
      %62 = sbr.rel (0) target = $region45
    $region44: #{flow_matching_forward.1} parent=1 // pred_region
      %s64 = ssub.s32 2048, 2048
      %65 = vsyncadd [#allocation5], %s64
      %s66 = sshll.u32 [#allocation6], 4
      %s67 = int_to_ptr.vmem [resolvable:$true] %s66
      %72 = dma.hbm_to_vmem [thread:$0]  %s10, 2048, %s67, [#allocation5], 128, 128, 8
    $region45: #{flow_matching_forward.1} parent=1 // pred_fallthru
      _
    // Predicated region
    $region46: #{flow_matching_forward.1} parent=1 // pred_check
      _
    $region47: #{flow_matching_forward.1} parent=1 // pred_check_branch
      %74 = sbr.rel (0) target = $region49
    $region48: #{flow_matching_forward.1} parent=1 // pred_region
      _
    $region49: #{flow_matching_forward.1} parent=1 // pred_fallthru
      _
    // Predicated region
    $region50: #{flow_matching_forward.1} parent=1 // pred_check
      _
    $region51: #{flow_matching_forward.1} parent=1 // pred_check_branch
      %76 = sbr.rel (0) target = $region53
    $region52: #{flow_matching_forward.1} parent=1 // pred_region
      _
    $region53: #{flow_matching_forward.1} parent=1 // pred_fallthru
      _
    // Predicated region
    $region54: #{flow_matching_forward.1} parent=1 // pred_check
      _
    $region55: #{flow_matching_forward.1} parent=1 // pred_check_branch
      %78 = sbr.rel (0) target = $region57
    $region56: #{flow_matching_forward.1} parent=1 // pred_region
      _
    $region57: #{flow_matching_forward.1} parent=1 // pred_fallthru
      _
    // Predicated region
    $region58: #{flow_matching_forward.1} parent=1 // pred_check
      _
    $region59: #{flow_matching_forward.1} parent=1 // pred_check_branch
      %80 = sbr.rel (0) target = $region61
    $region60: #{flow_matching_forward.1} parent=1 // pred_region
      %81 = dma.done [#allocation3], 2048
    $region61: #{flow_matching_forward.1} parent=1 // pred_fallthru
      _
    // Predicated region
    $region62: #{flow_matching_forward.1} parent=1 // pred_check
      _
    $region63: #{flow_matching_forward.1} parent=1 // pred_check_branch
      %83 = sbr.rel (0) target = $region65
    $region64: #{flow_matching_forward.1} parent=1 // pred_region
      %84 = dma.done [#allocation5], 2048
    $region65: #{flow_matching_forward.1} parent=1 // pred_fallthru
      _
    // Predicated region
    $region66: #{flow_matching_forward.1} parent=1 // pred_check
      _
    $region67: #{flow_matching_forward.1} parent=1 // pred_check_branch
      %86 = sbr.rel (0) target = $region69
    $region68: #{flow_matching_forward.1} parent=1 // pred_region
      %87 = dma.done [#allocation5], 2048
    $region69: #{flow_matching_forward.1} parent=1 // pred_fallthru
      _
    %v88 = vld [vmem:[%s0] sm:$0xff]
    %v89 = vld [vmem:[%s1] sm:$0xff]
    %v90 = vld [vmem:[%s2] sm:$0x7]
    %92 = vset.pattern.permute.xlu0 0
    %93 = vperm.xlu0 %92, %v89
    %v94 = vpop.permute.xlu0 %93
    %v96 = vlaneseq
    %v97 = vshrl.u32 %v96, 7
    %v98 = vsub.s32 2, %v97
    %v99 = vrot.slane %v90, %v98
    %v100 = vmul.f32 %v94, %v99
    %v101 = vld [vmem:[%s3] sm:$0x1]
    %v103 = vlaneseq
    %v104 = vshrl.u32 %v103, 7
    %v105 = vsub.s32 0, %v104
    %v106 = vrot.slane %v101, %v105
    %v108 = vadd.f32 %v100, %v106
    %110 = vset.pattern.permute.xlu0 0
    %111 = vperm.xlu0 %110, %v88
    %v112 = vpop.permute.xlu0 %111
    %v114 = vlaneseq
    %v115 = vshrl.u32 %v114, 7
    %v116 = vsub.s32 0, %v115
    %v117 = vrot.slane %v90, %v116
    %v118 = vmul.f32 %v112, %v117
    %v119 = vadd.f32 %v108, %v118
    %120 = vset.pattern.permute.xlu0 1
    %121 = vperm.xlu0 %120, %v88
    %v122 = vpop.permute.xlu0 %121
    %v124 = vlaneseq
    %v125 = vshrl.u32 %v124, 7
    %v126 = vsub.s32 1, %v125
    %v127 = vrot.slane %v90, %v126
    %v128 = vmul.f32 %v122, %v127
    %v129 = vadd.f32 %v119, %v128
    %v130 = vmul.f32 %v129, 0.01
    %v131 = vmax.f32 %v129, %v130
    %v132 = vld [vmem:[%s4] sm:$0xff]
    %v133 = vld [vmem:[%s4 + $0x8] sm:$0xff]
    %v134 = vld [vmem:[%s4 + $0x10] sm:$0xff]
    %v135 = vld [vmem:[%s4 + $0x18] sm:$0xff]
    %v136 = vld [vmem:[%s4 + $0x20] sm:$0xff]
    %v137 = vld [vmem:[%s4 + $0x28] sm:$0xff]
    %v138 = vld [vmem:[%s4 + $0x30] sm:$0xff]
    %v139 = vld [vmem:[%s4 + $0x38] sm:$0xff]
    %v140 = vld [vmem:[%s4 + $0x40] sm:$0xff]
    %v141 = vld [vmem:[%s4 + $0x48] sm:$0xff]
    %v142 = vld [vmem:[%s4 + $0x50] sm:$0xff]
    %v143 = vld [vmem:[%s4 + $0x58] sm:$0xff]
    %v144 = vld [vmem:[%s4 + $0x60] sm:$0xff]
    %v145 = vld [vmem:[%s4 + $0x68] sm:$0xff]
    %v146 = vld [vmem:[%s4 + $0x70] sm:$0xff]
    %v147 = vld [vmem:[%s4 + $0x78] sm:$0xff]
    %v148 = vld [vmem:[%s5] sm:$0x1]
    %v150 = vlaneseq
    %v151 = vshrl.u32 %v150, 7
    %v152 = vsub.s32 0, %v151
    %v153 = vrot.slane %v148, %v152
    %155 = vmatprep.subr.mxu0 0.0
    %156 = vmatpush1.msra.mxu0 %v147
    %157 = vmatprep.subr.mxu0 0.0
    %158 = vmatpush1.msra.mxu0 %v146
    %159 = vmatprep.subr.mxu0 0.0
    %160 = vmatpush1.msra.mxu0 %v145
    %161 = vmatprep.subr.mxu0 0.0
    %162 = vmatpush1.msra.mxu0 %v144
    %163 = vmatprep.subr.mxu0 0.0
    %164 = vmatpush1.msra.mxu0 %v143
    %165 = vmatprep.subr.mxu0 0.0
    %166 = vmatpush1.msra.mxu0 %v142
    %167 = vmatprep.subr.mxu0 0.0
    %168 = vmatpush1.msra.mxu0 %v141
    %169 = vmatprep.subr.mxu0 0.0
    %170 = vmatpush1.msra.mxu0 %v140
    %171 = vmatprep.subr.mxu0 0.0
    %172 = vmatpush1.msra.mxu0 %v139
    %173 = vmatprep.subr.mxu0 0.0
    %174 = vmatpush1.msra.mxu0 %v138
    %175 = vmatprep.subr.mxu0 0.0
    %176 = vmatpush1.msra.mxu0 %v137
    %177 = vmatprep.subr.mxu0 0.0
    %178 = vmatpush1.msra.mxu0 %v136
    %179 = vmatprep.subr.mxu0 0.0
    %180 = vmatpush1.msra.mxu0 %v135
    %181 = vmatprep.subr.mxu0 0.0
    %182 = vmatpush1.msra.mxu0 %v134
    %183 = vmatprep.subr.mxu0 0.0
    %184 = vmatpush1.msra.mxu0 %v133
    %185 = vmatprep.subr.mxu0 0.0
    %186 = vmatpush1.msra.mxu0 %v132
    %187 = vmatprep.subr.mxu0 0.0
    %188 = vmatpush2.msra.mxu0 0.0
    %189 = vmatprep.subr.mxu0 0.0
    %190 = vmatpush2.msra.mxu0 0.0
    %191 = vmatprep.subr.mxu0 0.0
    %192 = vmatpush2.msra.mxu0 0.0
    %193 = vmatprep.subr.mxu0 0.0
    %194 = vmatpush2.msra.mxu0 0.0
    %195 = vmatprep.subr.mxu0 0.0
    %196 = vmatpush2.msra.mxu0 0.0
    %197 = vmatprep.subr.mxu0 0.0
    %198 = vmatpush2.msra.mxu0 0.0
    %199 = vmatprep.subr.mxu0 0.0
    %200 = vmatpush2.msra.mxu0 0.0
    %201 = vmatprep.subr.mxu0 0.0
    %202 = vmatpush2.msra.mxu0 0.0
    %203 = vmatprep.subr.mxu0 0.0
    %204 = vmatpush2.msra.mxu0 0.0
    %205 = vmatprep.subr.mxu0 0.0
    %206 = vmatpush2.msra.mxu0 0.0
    %207 = vmatprep.subr.mxu0 0.0
    %208 = vmatpush2.msra.mxu0 0.0
    %209 = vmatprep.subr.mxu0 0.0
    %210 = vmatpush2.msra.mxu0 0.0
    %211 = vmatprep.subr.mxu0 0.0
    %212 = vmatpush2.msra.mxu0 0.0
    %213 = vmatprep.subr.mxu0 0.0
    %214 = vmatpush2.msra.mxu0 0.0
    %215 = vmatprep.subr.mxu0 0.0
    %216 = vmatpush2.msra.mxu0 0.0
    %217 = vmatprep.subr.mxu0 0.0
    %218 = vmatpush2.msra.mxu0 0.0
    %219 = vmatprep.mubr.f32.mxu0 0.0
    %220 = vmatmul.mubr.f32.gmra.mxu0 %v131
    %v221 = vpop.f32.mrf.mxu0
    %v222 = vadd.f32 %v153, %v221
    %v223 = vpop.f32.mrf.mxu0
    %224 = vdwg.mxu0
    %v225 = vmul.f32 %v222, 0.01
    %v226 = vmax.f32 %v222, %v225
    %v227 = vld [vmem:[#allocation2] sm:$0xff]
    %v228 = vld [vmem:[#allocation2 + $0x8] sm:$0xff]
    %v229 = vld [vmem:[#allocation2 + $0x10] sm:$0xff]
    %v230 = vld [vmem:[#allocation2 + $0x18] sm:$0xff]
    %v231 = vld [vmem:[#allocation2 + $0x20] sm:$0xff]
    %v232 = vld [vmem:[#allocation2 + $0x28] sm:$0xff]
    %v233 = vld [vmem:[#allocation2 + $0x30] sm:$0xff]
    %v234 = vld [vmem:[#allocation2 + $0x38] sm:$0xff]
    %v235 = vld [vmem:[#allocation2 + $0x40] sm:$0xff]
    %v236 = vld [vmem:[#allocation2 + $0x48] sm:$0xff]
    %v237 = vld [vmem:[#allocation2 + $0x50] sm:$0xff]
    %v238 = vld [vmem:[#allocation2 + $0x58] sm:$0xff]
    %v239 = vld [vmem:[#allocation2 + $0x60] sm:$0xff]
    %v240 = vld [vmem:[#allocation2 + $0x68] sm:$0xff]
    %v241 = vld [vmem:[#allocation2 + $0x70] sm:$0xff]
    %v242 = vld [vmem:[#allocation2 + $0x78] sm:$0xff]
    %v243 = vld [vmem:[%s7] sm:$0x1]
    %v245 = vlaneseq
    %v246 = vshrl.u32 %v245, 7
    %v247 = vsub.s32 0, %v246
    %v248 = vrot.slane %v243, %v247
    %250 = vmatprep.subr.mxu0 0.0
    %251 = vmatpush1.msra.mxu0 %v242
    %252 = vmatprep.subr.mxu0 0.0
    %253 = vmatpush1.msra.mxu0 %v241
    %254 = vmatprep.subr.mxu0 0.0
    %255 = vmatpush1.msra.mxu0 %v240
    %256 = vmatprep.subr.mxu0 0.0
    %257 = vmatpush1.msra.mxu0 %v239
    %258 = vmatprep.subr.mxu0 0.0
    %259 = vmatpush1.msra.mxu0 %v238
    %260 = vmatprep.subr.mxu0 0.0
    %261 = vmatpush1.msra.mxu0 %v237
    %262 = vmatprep.subr.mxu0 0.0
    %263 = vmatpush1.msra.mxu0 %v236
    %264 = vmatprep.subr.mxu0 0.0
    %265 = vmatpush1.msra.mxu0 %v235
    %266 = vmatprep.subr.mxu0 0.0
    %267 = vmatpush1.msra.mxu0 %v234
    %268 = vmatprep.subr.mxu0 0.0
    %269 = vmatpush1.msra.mxu0 %v233
    %270 = vmatprep.subr.mxu0 0.0
    %271 = vmatpush1.msra.mxu0 %v232
    %272 = vmatprep.subr.mxu0 0.0
    %273 = vmatpush1.msra.mxu0 %v231
    %274 = vmatprep.subr.mxu0 0.0
    %275 = vmatpush1.msra.mxu0 %v230
    %276 = vmatprep.subr.mxu0 0.0
    %277 = vmatpush1.msra.mxu0 %v229
    %278 = vmatprep.subr.mxu0 0.0
    %279 = vmatpush1.msra.mxu0 %v228
    %280 = vmatprep.subr.mxu0 0.0
    %281 = vmatpush1.msra.mxu0 %v227
    %282 = vmatprep.subr.mxu0 0.0
    %283 = vmatpush2.msra.mxu0 0.0
    %284 = vmatprep.subr.mxu0 0.0
    %285 = vmatpush2.msra.mxu0 0.0
    %286 = vmatprep.subr.mxu0 0.0
    %287 = vmatpush2.msra.mxu0 0.0
    %288 = vmatprep.subr.mxu0 0.0
    %289 = vmatpush2.msra.mxu0 0.0
    %290 = vmatprep.subr.mxu0 0.0
    %291 = vmatpush2.msra.mxu0 0.0
    %292 = vmatprep.subr.mxu0 0.0
    %293 = vmatpush2.msra.mxu0 0.0
    %294 = vmatprep.subr.mxu0 0.0
    %295 = vmatpush2.msra.mxu0 0.0
    %296 = vmatprep.subr.mxu0 0.0
    %297 = vmatpush2.msra.mxu0 0.0
    %298 = vmatprep.subr.mxu0 0.0
    %299 = vmatpush2.msra.mxu0 0.0
    %300 = vmatprep.subr.mxu0 0.0
    %301 = vmatpush2.msra.mxu0 0.0
    %302 = vmatprep.subr.mxu0 0.0
    %303 = vmatpush2.msra.mxu0 0.0
    %304 = vmatprep.subr.mxu0 0.0
    %305 = vmatpush2.msra.mxu0 0.0
    %306 = vmatprep.subr.mxu0 0.0
    %307 = vmatpush2.msra.mxu0 0.0
    %308 = vmatprep.subr.mxu0 0.0
    %309 = vmatpush2.msra.mxu0 0.0
    %310 = vmatprep.subr.mxu0 0.0
    %311 = vmatpush2.msra.mxu0 0.0
    %312 = vmatprep.subr.mxu0 0.0
    %313 = vmatpush2.msra.mxu0 0.0
    %314 = vmatprep.mubr.f32.mxu0 0.0
    %315 = vmatmul.mubr.f32.gmra.mxu0 %v226
    %v316 = vpop.f32.mrf.mxu0
    %v317 = vadd.f32 %v248, %v316
    %v318 = vpop.f32.mrf.mxu0
    %319 = vdwg.mxu0
    %v320 = vmul.f32 %v317, 0.01
    %v321 = vmax.f32 %v317, %v320
    %v322 = vld [vmem:[#allocation4] sm:$0xff]
    %v323 = vld [vmem:[#allocation4 + $0x8] sm:$0xff]
    %v324 = vld [vmem:[#allocation4 + $0x10] sm:$0xff]
    %v325 = vld [vmem:[#allocation4 + $0x18] sm:$0xff]
    %v326 = vld [vmem:[#allocation4 + $0x20] sm:$0xff]
    %v327 = vld [vmem:[#allocation4 + $0x28] sm:$0xff]
    %v328 = vld [vmem:[#allocation4 + $0x30] sm:$0xff]
    %v329 = vld [vmem:[#allocation4 + $0x38] sm:$0xff]
    %v330 = vld [vmem:[#allocation4 + $0x40] sm:$0xff]
    %v331 = vld [vmem:[#allocation4 + $0x48] sm:$0xff]
    %v332 = vld [vmem:[#allocation4 + $0x50] sm:$0xff]
    %v333 = vld [vmem:[#allocation4 + $0x58] sm:$0xff]
    %v334 = vld [vmem:[#allocation4 + $0x60] sm:$0xff]
    %v335 = vld [vmem:[#allocation4 + $0x68] sm:$0xff]
    %v336 = vld [vmem:[#allocation4 + $0x70] sm:$0xff]
    %v337 = vld [vmem:[#allocation4 + $0x78] sm:$0xff]
    %v338 = vld [vmem:[%s9] sm:$0x1]
    %v340 = vlaneseq
    %v341 = vshrl.u32 %v340, 7
    %v342 = vsub.s32 0, %v341
    %v343 = vrot.slane %v338, %v342
    %345 = vmatprep.subr.mxu0 0.0
    %346 = vmatpush1.msra.mxu0 %v337
    %347 = vmatprep.subr.mxu0 0.0
    %348 = vmatpush1.msra.mxu0 %v336
    %349 = vmatprep.subr.mxu0 0.0
    %350 = vmatpush1.msra.mxu0 %v335
    %351 = vmatprep.subr.mxu0 0.0
    %352 = vmatpush1.msra.mxu0 %v334
    %353 = vmatprep.subr.mxu0 0.0
    %354 = vmatpush1.msra.mxu0 %v333
    %355 = vmatprep.subr.mxu0 0.0
    %356 = vmatpush1.msra.mxu0 %v332
    %357 = vmatprep.subr.mxu0 0.0
    %358 = vmatpush1.msra.mxu0 %v331
    %359 = vmatprep.subr.mxu0 0.0
    %360 = vmatpush1.msra.mxu0 %v330
    %361 = vmatprep.subr.mxu0 0.0
    %362 = vmatpush1.msra.mxu0 %v329
    %363 = vmatprep.subr.mxu0 0.0
    %364 = vmatpush1.msra.mxu0 %v328
    %365 = vmatprep.subr.mxu0 0.0
    %366 = vmatpush1.msra.mxu0 %v327
    %367 = vmatprep.subr.mxu0 0.0
    %368 = vmatpush1.msra.mxu0 %v326
    %369 = vmatprep.subr.mxu0 0.0
    %370 = vmatpush1.msra.mxu0 %v325
    %371 = vmatprep.subr.mxu0 0.0
    %372 = vmatpush1.msra.mxu0 %v324
    %373 = vmatprep.subr.mxu0 0.0
    %374 = vmatpush1.msra.mxu0 %v323
    %375 = vmatprep.subr.mxu0 0.0
    %376 = vmatpush1.msra.mxu0 %v322
    %377 = vmatprep.subr.mxu0 0.0
    %378 = vmatpush2.msra.mxu0 0.0
    %379 = vmatprep.subr.mxu0 0.0
    %380 = vmatpush2.msra.mxu0 0.0
    %381 = vmatprep.subr.mxu0 0.0
    %382 = vmatpush2.msra.mxu0 0.0
    %383 = vmatprep.subr.mxu0 0.0
    %384 = vmatpush2.msra.mxu0 0.0
    %385 = vmatprep.subr.mxu0 0.0
    %386 = vmatpush2.msra.mxu0 0.0
    %387 = vmatprep.subr.mxu0 0.0
    %388 = vmatpush2.msra.mxu0 0.0
    %389 = vmatprep.subr.mxu0 0.0
    %390 = vmatpush2.msra.mxu0 0.0
    %391 = vmatprep.subr.mxu0 0.0
    %392 = vmatpush2.msra.mxu0 0.0
    %393 = vmatprep.subr.mxu0 0.0
    %394 = vmatpush2.msra.mxu0 0.0
    %395 = vmatprep.subr.mxu0 0.0
    %396 = vmatpush2.msra.mxu0 0.0
    %397 = vmatprep.subr.mxu0 0.0
    %398 = vmatpush2.msra.mxu0 0.0
    %399 = vmatprep.subr.mxu0 0.0
    %400 = vmatpush2.msra.mxu0 0.0
    %401 = vmatprep.subr.mxu0 0.0
    %402 = vmatpush2.msra.mxu0 0.0
    %403 = vmatprep.subr.mxu0 0.0
    %404 = vmatpush2.msra.mxu0 0.0
    %405 = vmatprep.subr.mxu0 0.0
    %406 = vmatpush2.msra.mxu0 0.0
    %407 = vmatprep.subr.mxu0 0.0
    %408 = vmatpush2.msra.mxu0 0.0
    %409 = vmatprep.mubr.f32.mxu0 0.0
    %410 = vmatmul.mubr.f32.gmra.mxu0 %v321
    %v411 = vpop.f32.mrf.mxu0
    %v412 = vadd.f32 %v343, %v411
    %v413 = vpop.f32.mrf.mxu0
    %414 = vdwg.mxu0
    %v415 = vmul.f32 %v412, 0.01
    %v416 = vmax.f32 %v412, %v415
    %v417 = vld [vmem:[#allocation6] sm:$0xff]
    %v418 = vld [vmem:[#allocation6 + $0x8] sm:$0xff]
    %v419 = vld [vmem:[#allocation6 + $0x10] sm:$0xff]
    %v420 = vld [vmem:[#allocation6 + $0x18] sm:$0xff]
    %v421 = vld [vmem:[#allocation6 + $0x20] sm:$0xff]
    %v422 = vld [vmem:[#allocation6 + $0x28] sm:$0xff]
    %v423 = vld [vmem:[#allocation6 + $0x30] sm:$0xff]
    %v424 = vld [vmem:[#allocation6 + $0x38] sm:$0xff]
    %v425 = vld [vmem:[#allocation6 + $0x40] sm:$0xff]
    %v426 = vld [vmem:[#allocation6 + $0x48] sm:$0xff]
    %v427 = vld [vmem:[#allocation6 + $0x50] sm:$0xff]
    %v428 = vld [vmem:[#allocation6 + $0x58] sm:$0xff]
    %v429 = vld [vmem:[#allocation6 + $0x60] sm:$0xff]
    %v430 = vld [vmem:[#allocation6 + $0x68] sm:$0xff]
    %v431 = vld [vmem:[#allocation6 + $0x70] sm:$0xff]
    %v432 = vld [vmem:[#allocation6 + $0x78] sm:$0xff]
    %v433 = vld [vmem:[%s11] sm:$0x1]
    %v435 = vlaneseq
    %v436 = vshrl.u32 %v435, 7
    %v437 = vsub.s32 0, %v436
    %v438 = vrot.slane %v433, %v437
    %440 = vmatprep.subr.mxu0 0.0
    %441 = vmatpush1.msra.mxu0 %v432
    %442 = vmatprep.subr.mxu0 0.0
    %443 = vmatpush1.msra.mxu0 %v431
    %444 = vmatprep.subr.mxu0 0.0
    %445 = vmatpush1.msra.mxu0 %v430
    %446 = vmatprep.subr.mxu0 0.0
    %447 = vmatpush1.msra.mxu0 %v429
    %448 = vmatprep.subr.mxu0 0.0
    %449 = vmatpush1.msra.mxu0 %v428
    %450 = vmatprep.subr.mxu0 0.0
    %451 = vmatpush1.msra.mxu0 %v427
    %452 = vmatprep.subr.mxu0 0.0
    %453 = vmatpush1.msra.mxu0 %v426
    %454 = vmatprep.subr.mxu0 0.0
    %455 = vmatpush1.msra.mxu0 %v425
    %456 = vmatprep.subr.mxu0 0.0
    %457 = vmatpush1.msra.mxu0 %v424
    %458 = vmatprep.subr.mxu0 0.0
    %459 = vmatpush1.msra.mxu0 %v423
    %460 = vmatprep.subr.mxu0 0.0
    %461 = vmatpush1.msra.mxu0 %v422
    %462 = vmatprep.subr.mxu0 0.0
    %463 = vmatpush1.msra.mxu0 %v421
    %464 = vmatprep.subr.mxu0 0.0
    %465 = vmatpush1.msra.mxu0 %v420
    %466 = vmatprep.subr.mxu0 0.0
    %467 = vmatpush1.msra.mxu0 %v419
    %468 = vmatprep.subr.mxu0 0.0
    %469 = vmatpush1.msra.mxu0 %v418
    %470 = vmatprep.subr.mxu0 0.0
    %471 = vmatpush1.msra.mxu0 %v417
    %472 = vmatprep.subr.mxu0 0.0
    %473 = vmatpush2.msra.mxu0 0.0
    %474 = vmatprep.subr.mxu0 0.0
    %475 = vmatpush2.msra.mxu0 0.0
    %476 = vmatprep.subr.mxu0 0.0
    %477 = vmatpush2.msra.mxu0 0.0
    %478 = vmatprep.subr.mxu0 0.0
    %479 = vmatpush2.msra.mxu0 0.0
    %480 = vmatprep.subr.mxu0 0.0
    %481 = vmatpush2.msra.mxu0 0.0
    %482 = vmatprep.subr.mxu0 0.0
    %483 = vmatpush2.msra.mxu0 0.0
    %484 = vmatprep.subr.mxu0 0.0
    %485 = vmatpush2.msra.mxu0 0.0
    %486 = vmatprep.subr.mxu0 0.0
    %487 = vmatpush2.msra.mxu0 0.0
    %488 = vmatprep.subr.mxu0 0.0
    %489 = vmatpush2.msra.mxu0 0.0
    %490 = vmatprep.subr.mxu0 0.0
    %491 = vmatpush2.msra.mxu0 0.0
    %492 = vmatprep.subr.mxu0 0.0
    %493 = vmatpush2.msra.mxu0 0.0
    %494 = vmatprep.subr.mxu0 0.0
    %495 = vmatpush2.msra.mxu0 0.0
    %496 = vmatprep.subr.mxu0 0.0
    %497 = vmatpush2.msra.mxu0 0.0
    %498 = vmatprep.subr.mxu0 0.0
    %499 = vmatpush2.msra.mxu0 0.0
    %500 = vmatprep.subr.mxu0 0.0
    %501 = vmatpush2.msra.mxu0 0.0
    %502 = vmatprep.subr.mxu0 0.0
    %503 = vmatpush2.msra.mxu0 0.0
    %504 = vmatprep.mubr.f32.mxu0 0.0
    %505 = vmatmul.mubr.f32.gmra.mxu0 %v416
    %v506 = vpop.f32.mrf.mxu0
    %v507 = vadd.f32 %v438, %v506
    %v508 = vpop.f32.mrf.mxu0
    %509 = vdwg.mxu0
    %v510 = vmul.f32 %v507, 0.01
    %v511 = vmax.f32 %v507, %v510
    %v512 = vld [vmem:[%s12] sm:$0xff]
    %v513 = vld [vmem:[%s12 + $0x8] sm:$0xff]
    %v514 = vld [vmem:[%s12 + $0x10] sm:$0xff]
    %v515 = vld [vmem:[%s12 + $0x18] sm:$0xff]
    %v516 = vld [vmem:[%s12 + $0x20] sm:$0xff]
    %v517 = vld [vmem:[%s12 + $0x28] sm:$0xff]
    %v518 = vld [vmem:[%s12 + $0x30] sm:$0xff]
    %v519 = vld [vmem:[%s12 + $0x38] sm:$0xff]
    %v520 = vld [vmem:[%s12 + $0x40] sm:$0xff]
    %v521 = vld [vmem:[%s12 + $0x48] sm:$0xff]
    %v522 = vld [vmem:[%s12 + $0x50] sm:$0xff]
    %v523 = vld [vmem:[%s12 + $0x58] sm:$0xff]
    %v524 = vld [vmem:[%s12 + $0x60] sm:$0xff]
    %v525 = vld [vmem:[%s12 + $0x68] sm:$0xff]
    %v526 = vld [vmem:[%s12 + $0x70] sm:$0xff]
    %v527 = vld [vmem:[%s12 + $0x78] sm:$0xff]
    %v528 = vld [vmem:[%s13] sm:$0x1]
    %v530 = vlaneseq
    %v531 = vshrl.u32 %v530, 7
    %v532 = vsub.s32 0, %v531
    %v533 = vrot.slane %v528, %v532
    %535 = vmatprep.subr.mxu0 0.0
    %536 = vmatpush1.msra.mxu0 %v527
    %537 = vmatprep.subr.mxu0 0.0
    %538 = vmatpush1.msra.mxu0 %v526
    %539 = vmatprep.subr.mxu0 0.0
    %540 = vmatpush1.msra.mxu0 %v525
    %541 = vmatprep.subr.mxu0 0.0
    %542 = vmatpush1.msra.mxu0 %v524
    %543 = vmatprep.subr.mxu0 0.0
    %544 = vmatpush1.msra.mxu0 %v523
    %545 = vmatprep.subr.mxu0 0.0
    %546 = vmatpush1.msra.mxu0 %v522
    %547 = vmatprep.subr.mxu0 0.0
    %548 = vmatpush1.msra.mxu0 %v521
    %549 = vmatprep.subr.mxu0 0.0
    %550 = vmatpush1.msra.mxu0 %v520
    %551 = vmatprep.subr.mxu0 0.0
    %552 = vmatpush1.msra.mxu0 %v519
    %553 = vmatprep.subr.mxu0 0.0
    %554 = vmatpush1.msra.mxu0 %v518
    %555 = vmatprep.subr.mxu0 0.0
    %556 = vmatpush1.msra.mxu0 %v517
    %557 = vmatprep.subr.mxu0 0.0
    %558 = vmatpush1.msra.mxu0 %v516
    %559 = vmatprep.subr.mxu0 0.0
    %560 = vmatpush1.msra.mxu0 %v515
    %561 = vmatprep.subr.mxu0 0.0
    %562 = vmatpush1.msra.mxu0 %v514
    %563 = vmatprep.subr.mxu0 0.0
    %564 = vmatpush1.msra.mxu0 %v513
    %565 = vmatprep.subr.mxu0 0.0
    %566 = vmatpush1.msra.mxu0 %v512
    %567 = vmatprep.subr.mxu0 0.0
    %568 = vmatpush2.msra.mxu0 0.0
    %569 = vmatprep.subr.mxu0 0.0
    %570 = vmatpush2.msra.mxu0 0.0
    %571 = vmatprep.subr.mxu0 0.0
    %572 = vmatpush2.msra.mxu0 0.0
    %573 = vmatprep.subr.mxu0 0.0
    %574 = vmatpush2.msra.mxu0 0.0
    %575 = vmatprep.subr.mxu0 0.0
    %576 = vmatpush2.msra.mxu0 0.0
    %577 = vmatprep.subr.mxu0 0.0
    %578 = vmatpush2.msra.mxu0 0.0
    %579 = vmatprep.subr.mxu0 0.0
    %580 = vmatpush2.msra.mxu0 0.0
    %581 = vmatprep.subr.mxu0 0.0
    %582 = vmatpush2.msra.mxu0 0.0
    %583 = vmatprep.subr.mxu0 0.0
    %584 = vmatpush2.msra.mxu0 0.0
    %585 = vmatprep.subr.mxu0 0.0
    %586 = vmatpush2.msra.mxu0 0.0
    %587 = vmatprep.subr.mxu0 0.0
    %588 = vmatpush2.msra.mxu0 0.0
    %589 = vmatprep.subr.mxu0 0.0
    %590 = vmatpush2.msra.mxu0 0.0
    %591 = vmatprep.subr.mxu0 0.0
    %592 = vmatpush2.msra.mxu0 0.0
    %593 = vmatprep.subr.mxu0 0.0
    %594 = vmatpush2.msra.mxu0 0.0
    %595 = vmatprep.subr.mxu0 0.0
    %596 = vmatpush2.msra.mxu0 0.0
    %597 = vmatprep.subr.mxu0 0.0
    %598 = vmatpush2.msra.mxu0 0.0
    %599 = vmatprep.mubr.f32.mxu0 0.0
    %600 = vmatmul.mubr.f32.gmra.mxu0 %v511
    %v601 = vpop.f32.mrf.mxu0
    %v602 = vadd.f32 %v533, %v601
    %v603 = vpop.f32.mrf.mxu0
    %604 = vdwg.mxu0
    %vm605 = vcmask 15360
    %606 = vst.msk [vmem:[%s14] sm:$0xff] %vm605, %v602
    // Predicated region
    $region70: #{flow_matching_forward.1} parent=1 // pred_check
      _
    $region71: #{flow_matching_forward.1} parent=1 // pred_check_branch
      %608 = sbr.rel (0) target = $region73
    $region72: #{flow_matching_forward.1} parent=1 // pred_region
      _
    $region73: #{flow_matching_forward.1} parent=1 // pred_fallthru
      _
    // Predicated region
    $region74: #{flow_matching_forward.1} parent=1 // pred_check
      _
    $region75: #{flow_matching_forward.1} parent=1 // pred_check_branch
      %610 = sbr.rel (0) target = $region77
    $region76: #{flow_matching_forward.1} parent=1 // pred_region
      _
    $region77: #{flow_matching_forward.1} parent=1 // pred_fallthru
      _
    %611 = vsyncpa [#allocation3], 1
    %612 = vsyncpa [#allocation5], 1

</llo_original>
